<compile_context>
chip_gen: v5e
topology: v5e:2x2
jax: 0.10.0
libtpu: 0.0.40
codegen_flags: <defaults>
</compile_context>

<pallas_src>
import functools
import math

import jax
import jax.numpy as jnp
from jax.experimental import pallas as pl
from jax.experimental.pallas import tpu as pltpu


LANES = 128
SUBLANES = 8
TB_MAX = 2048     # big tiles amortise ~0.35us/grid-step fixed cost
OUT = 8           # narrow f32 output slab: col 0 = q1, col 1 = q2


def _round_up(n, m):
    return ((n + m - 1) // m) * m


def _cdiv(a, b):
    return -(-a // b)


# ---------------------------------------------------------------------------
# Pallas kernel: both Q-heads in one (lane-packed) matmul path.
# ---------------------------------------------------------------------------
def _double_q_kernel(z_ref, w1_ref, b1_ref, w2_ref, b2_ref, w3_ref, b3_ref,
                     out_ref, *, split_heads, hp):
    zb = z_ref[...].astype(jnp.bfloat16)

    # Layer 1: single fused matmul over the [x|y] slab; f32 accumulate.
    h = jnp.dot(zb, w1_ref[...], preferred_element_type=jnp.float32) + b1_ref[...]
    h = jnp.maximum(h, 0.0).astype(jnp.bfloat16)

    if not split_heads:
        # 2H <= 128: block-diagonal W2 — padding to 128 lanes is free here.
        h = jnp.dot(h, w2_ref[...], preferred_element_type=jnp.float32) + b2_ref[...]
        h = jnp.maximum(h, 0.0).astype(jnp.bfloat16)
        q = jnp.dot(h, w3_ref[...], preferred_element_type=jnp.float32) + b3_ref[...]
    else:
        # 2H > 128: two per-head (Hp,Hp) dots avoid the zero off-diagonal
        # blocks of a (2Hp,2Hp) block-diagonal weight (4x MXU waste).
        ha = h[:, :hp]
        hb = h[:, hp:]
        ga = jnp.maximum(
            jnp.dot(ha, w2_ref[0], preferred_element_type=jnp.float32)
            + b2_ref[:, :hp], 0.0).astype(jnp.bfloat16)
        gb = jnp.maximum(
            jnp.dot(hb, w2_ref[1], preferred_element_type=jnp.float32)
            + b2_ref[:, hp:], 0.0).astype(jnp.bfloat16)
        w3 = w3_ref[...]
        q = (jnp.dot(ga, w3[:hp], preferred_element_type=jnp.float32)
             + jnp.dot(gb, w3[hp:], preferred_element_type=jnp.float32)
             + b3_ref[...])

    out_ref[...] = q


def _const_index_map(ndim):
    def imap(i):
        return (0,) * ndim
    return imap


def double_q_forward(x, y, kp):
    """x: (B, stat), y: (B, act), kp: packed kernel params (see pack_params)."""
    B = x.shape[0]
    Dp = kp["w1"].shape[0]

    # Fused [x|y] slab — the concat is folded into the (cheap) padding copy.
    z = jnp.concatenate([x, y], axis=-1)
    D = z.shape[1]

    # --- batch tiling --------------------------------------------------------
    B_pad = _round_up(max(B, SUBLANES), SUBLANES)
    n_tiles = max(1, _cdiv(B_pad, TB_MAX))
    if B_pad >= 2 * LANES:
        # Enough rows to amortise per-step overhead: give v7x's 2nd TC work.
        n_tiles = max(2, n_tiles)
        n_tiles += n_tiles % 2          # even step count maps evenly onto 2 TCs
    TB = _round_up(_cdiv(B_pad, n_tiles), SUBLANES)   # divisor-aware: waste < 1 tile
    B_grid = n_tiles * TB

    if z.shape != (B_grid, Dp):
        z = jnp.pad(z, ((0, B_grid - B), (0, Dp - D)))

    kernel = functools.partial(
        _double_q_kernel, split_heads=kp["split_heads"], hp=kp["hp"])

    def resident(arr):
        # Same block every grid step -> stays VMEM-resident (no re-DMA).
        return pl.BlockSpec(arr.shape, _const_index_map(arr.ndim))

    out = pl.pallas_call(
        kernel,
        grid=(n_tiles,),
        in_specs=[
            pl.BlockSpec((TB, Dp), lambda i: (i, 0)),
            resident(kp["w1"]), resident(kp["b1"]),
            resident(kp["w2"]), resident(kp["b2"]),
            resident(kp["w3"]), resident(kp["b3"]),
        ],
        out_specs=pl.BlockSpec((TB, OUT), lambda i: (i, 0)),
        out_shape=jax.ShapeDtypeStruct((B_grid, OUT), jnp.float32),
        compiler_params=pltpu.CompilerParams(
            dimension_semantics=("parallel",)),
    )(z, kp["w1"], kp["b1"], kp["w2"], kp["b2"], kp["w3"], kp["b3"])

    # Padded batch rows hold garbage (ReLU of biases) — this [:B] slice is load-bearing.
    q = out[:B, :2]
    return q[:, 0:1], q[:, 1:2]


# ---------------------------------------------------------------------------
# Deterministic parameter init matching the torch module:
#   nn.init.xavier_uniform_(weight, gain=1.0); bias = 0.1
# Torch Linear weight is (out, in); we transpose to (in, out) for x @ W.
# ---------------------------------------------------------------------------
def _xavier_uniform(key, out_dim, in_dim):
    bound = math.sqrt(6.0 / (in_dim + out_dim))
    w = jax.random.uniform(key, (out_dim, in_dim), jnp.float32, -bound, bound)
    return w.T  # -> (in, out)


def init_raw_params(key, stat_size, hidden_size, act_size):
    d = stat_size + act_size
    h = hidden_size
    keys = jax.random.split(key, 6)
    p = {}
    # net1
    p["w1a"] = _xavier_uniform(keys[0], h, d)
    p["b1a"] = jnp.full((1, h), 0.1, jnp.float32)
    p["w2a"] = _xavier_uniform(keys[1], h, h)
    p["b2a"] = jnp.full((1, h), 0.1, jnp.float32)
    p["w3a"] = _xavier_uniform(keys[2], 1, h)
    p["b3a"] = jnp.full((1, 1), 0.1, jnp.float32)
    # net2
    p["w1b"] = _xavier_uniform(keys[3], h, d)
    p["b1b"] = jnp.full((1, h), 0.1, jnp.float32)
    p["w2b"] = _xavier_uniform(keys[4], h, h)
    p["b2b"] = jnp.full((1, h), 0.1, jnp.float32)
    p["w3b"] = _xavier_uniform(keys[5], 1, h)
    p["b3b"] = jnp.full((1, 1), 0.1, jnp.float32)
    return p


def pack_params(raw, stat_size, hidden_size, act_size):
    """Fuse both heads into lane-packed weights; cast matmul operands to bf16."""
    H = hidden_size
    D = stat_size + act_size
    Dp = _round_up(D, SUBLANES)
    bf = jnp.bfloat16

    split_heads = (2 * H > LANES)
    if split_heads:
        Hp = _round_up(H, LANES)   # each head padded to a lane-aligned block
        off2 = Hp                  # head-2 lane offset in the fused layout
    else:
        Hp = LANES // 2            # fused width = 128 lanes total
        off2 = H
    HF = 2 * Hp

    # Layer 1: concat folded in; both heads side by side along lanes.
    w1 = jnp.zeros((Dp, HF), jnp.float32)
    w1 = w1.at[:D, :H].set(raw["w1a"]).at[:D, off2:off2 + H].set(raw["w1b"])
    b1 = jnp.zeros((1, HF), jnp.float32)
    b1 = b1.at[:, :H].set(raw["b1a"]).at[:, off2:off2 + H].set(raw["b1b"])

    # Layer 2: block-diagonal only while 2H <= 128; otherwise stacked per-head.
    if split_heads:
        w2 = jnp.zeros((2, Hp, Hp), jnp.float32)
        w2 = w2.at[0, :H, :H].set(raw["w2a"]).at[1, :H, :H].set(raw["w2b"])
    else:
        w2 = jnp.zeros((HF, HF), jnp.float32)
        w2 = (w2.at[:H, :H].set(raw["w2a"])
                 .at[off2:off2 + H, off2:off2 + H].set(raw["w2b"]))
    b2 = jnp.zeros((1, HF), jnp.float32)
    b2 = b2.at[:, :H].set(raw["b2a"]).at[:, off2:off2 + H].set(raw["b2b"])

    # Layer 3: narrow (HF, OUT=8) projection; col 0 <- net1, col 1 <- net2.
    w3 = jnp.zeros((HF, OUT), jnp.float32)
    w3 = (w3.at[:H, 0].set(raw["w3a"][:, 0])
             .at[off2:off2 + H, 1].set(raw["w3b"][:, 0]))
    b3 = jnp.zeros((1, OUT), jnp.float32)
    b3 = b3.at[0, 0].set(raw["b3a"][0, 0]).at[0, 1].set(raw["b3b"][0, 0])

    return {
        "w1": w1.astype(bf), "b1": b1,
        "w2": w2.astype(bf), "b2": b2,
        "w3": w3.astype(bf), "b3": b3,
        "split_heads": split_heads, "hp": Hp,
    }


# ---------------------------------------------------------------------------
# Reference (plain JAX, f32 — the torch semantics) for correctness checks.
# ---------------------------------------------------------------------------
def double_q_ref(x, y, p):
    z = jnp.concatenate([x, y], axis=-1)

    def head(w1, b1, w2, b2, w3, b3):
        h = jnp.maximum(z @ w1 + b1, 0.0)
        h = jnp.maximum(h @ w2 + b2, 0.0)
        return h @ w3 + b3

    q1 = head(p["w1a"], p["b1a"], p["w2a"], p["b2a"], p["w3a"], p["b3a"])
    q2 = head(p["w1b"], p["b1b"], p["w2b"], p["b2b"], p["w3b"], p["b3b"])
    return q1, q2


def _run_case(key, stat, act, hidden, batch, tol):
    k_p, k_x, k_y = jax.random.split(key, 3)
    raw = init_raw_params(k_p, stat, hidden, act)
    kp = pack_params(raw, stat, hidden, act)

    x = jax.random.normal(k_x, (batch, stat), jnp.float32)
    y = jax.random.normal(k_y, (batch, act), jnp.float32)

    q1, q2 = double_q_forward(x, y, kp)
    jax.block_until_ready((q1, q2))

    r1, r2 = double_q_ref(x, y, raw)
    assert q1.shape == (batch, 1) and q2.shape == (batch, 1)
    # bf16 matmul operands (f32 accumulate) compared to f32 torch semantics.
    assert jnp.allclose(q1, r1, atol=tol, rtol=tol), (
        f"q1 max err {jnp.max(jnp.abs(q1 - r1))}")
    assert jnp.allclose(q2, r2, atol=tol, rtol=tol), (
        f"q2 max err {jnp.max(jnp.abs(q2 - r2))}")


if __name__ == "__main__":
    key = jax.random.PRNGKey(0)
    k1, k2 = jax.random.split(key)

    # Case 1: tiny demo shapes (fused block-diag W2 path, single-tile grid).
    _run_case(k1, stat=16, act=8, hidden=32, batch=8, tol=5e-2)

    # Case 2: wider hidden + bigger batch (split-W2 path, 2-step parallel grid).
    _run_case(k2, stat=16, act=8, hidden=256, batch=260, tol=5e-2)

    print("KERNEL_OK")
</pallas_src>

<mosaic_0001>
module attributes {stable_mosaic.version = 11 : i64} {
  func.func @_double_q_kernel(%arg0: i32, %arg1: memref<8x24xf32, #tpu.memory_space<vmem>>, %arg2: memref<24x128xbf16, #tpu.memory_space<vmem>>, %arg3: memref<1x128xf32, #tpu.memory_space<vmem>>, %arg4: memref<128x128xbf16, #tpu.memory_space<vmem>>, %arg5: memref<1x128xf32, #tpu.memory_space<vmem>>, %arg6: memref<128x8xbf16, #tpu.memory_space<vmem>>, %arg7: memref<1x8xf32, #tpu.memory_space<vmem>>, %arg8: memref<8x8xf32, #tpu.memory_space<vmem>>) attributes {dimension_semantics = [#tpu.dimension_semantics<parallel>], iteration_bounds = array<i64: 1>, scalar_prefetch = 0 : i64, scratch_operands = 0 : i64, tpu.core_type = #tpu.core_type<tc>, window_params = [{transform_indices = @transform_0, window_bounds = array<i64: 8, 24>}, {pipeline_mode = #tpu.pipeline_mode<synchronous>, transform_indices = @transform_1, window_bounds = array<i64: 24, 128>}, {pipeline_mode = #tpu.pipeline_mode<synchronous>, transform_indices = @transform_2, window_bounds = array<i64: 1, 128>}, {pipeline_mode = #tpu.pipeline_mode<synchronous>, transform_indices = @transform_3, window_bounds = array<i64: 128, 128>}, {pipeline_mode = #tpu.pipeline_mode<synchronous>, transform_indices = @transform_4, window_bounds = array<i64: 1, 128>}, {pipeline_mode = #tpu.pipeline_mode<synchronous>, transform_indices = @transform_5, window_bounds = array<i64: 128, 8>}, {pipeline_mode = #tpu.pipeline_mode<synchronous>, transform_indices = @transform_6, window_bounds = array<i64: 1, 8>}, {transform_indices = @transform_7, window_bounds = array<i64: 8, 8>}]} {
    %c0 = arith.constant 0 : index
    %c0_0 = arith.constant 0 : index
    %0 = vector.load %arg1[%c0, %c0_0] : memref<8x24xf32, #tpu.memory_space<vmem>>, vector<8x24xf32>
    %1 = arith.truncf %0 : vector<8x24xf32> to vector<8x24xbf16>
    %c0_1 = arith.constant 0 : index
    %c0_2 = arith.constant 0 : index
    %2 = vector.load %arg2[%c0_1, %c0_2] : memref<24x128xbf16, #tpu.memory_space<vmem>>, vector<24x128xbf16>
    %cst = arith.constant dense<0.000000e+00> : vector<8x128xf32>
    %3 = tpu.matmul %1, %2, %cst {dimension_numbers = #tpu.dot_dimension_numbers<[1], [0], [0], [1], [0, 0, 1, 1], [], []>} : vector<8x24xbf16>, vector<24x128xbf16>, vector<8x128xf32> -> vector<8x128xf32>
    %c0_3 = arith.constant 0 : index
    %c0_4 = arith.constant 0 : index
    %4 = vector.load %arg3[%c0_3, %c0_4] : memref<1x128xf32, #tpu.memory_space<vmem>>, vector<1x128xf32>
    %5 = vector.broadcast %4 : vector<1x128xf32> to vector<8x128xf32>
    %6 = arith.addf %3, %5 : vector<8x128xf32>
    %cst_5 = arith.constant 0.000000e+00 : f32
    %7 = vector.broadcast %cst_5 : f32 to vector<8x128xf32>
    %8 = arith.maximumf %6, %7 : vector<8x128xf32>
    %9 = arith.truncf %8 : vector<8x128xf32> to vector<8x128xbf16>
    %c0_6 = arith.constant 0 : index
    %c0_7 = arith.constant 0 : index
    %10 = vector.load %arg4[%c0_6, %c0_7] : memref<128x128xbf16, #tpu.memory_space<vmem>>, vector<128x128xbf16>
    %cst_8 = arith.constant dense<0.000000e+00> : vector<8x128xf32>
    %11 = tpu.matmul %9, %10, %cst_8 {dimension_numbers = #tpu.dot_dimension_numbers<[1], [0], [0], [1], [0, 0, 1, 1], [], []>} : vector<8x128xbf16>, vector<128x128xbf16>, vector<8x128xf32> -> vector<8x128xf32>
    %c0_9 = arith.constant 0 : index
    %c0_10 = arith.constant 0 : index
    %12 = vector.load %arg5[%c0_9, %c0_10] : memref<1x128xf32, #tpu.memory_space<vmem>>, vector<1x128xf32>
    %13 = vector.broadcast %12 : vector<1x128xf32> to vector<8x128xf32>
    %14 = arith.addf %11, %13 : vector<8x128xf32>
    %cst_11 = arith.constant 0.000000e+00 : f32
    %15 = vector.broadcast %cst_11 : f32 to vector<8x128xf32>
    %16 = arith.maximumf %14, %15 : vector<8x128xf32>
    %17 = arith.truncf %16 : vector<8x128xf32> to vector<8x128xbf16>
    %c0_12 = arith.constant 0 : index
    %c0_13 = arith.constant 0 : index
    %18 = vector.load %arg6[%c0_12, %c0_13] : memref<128x8xbf16, #tpu.memory_space<vmem>>, vector<128x8xbf16>
    %cst_14 = arith.constant dense<0.000000e+00> : vector<8x8xf32>
    %19 = tpu.matmul %17, %18, %cst_14 {dimension_numbers = #tpu.dot_dimension_numbers<[1], [0], [0], [1], [0, 0, 1, 1], [], []>} : vector<8x128xbf16>, vector<128x8xbf16>, vector<8x8xf32> -> vector<8x8xf32>
    %c0_15 = arith.constant 0 : index
    %c0_16 = arith.constant 0 : index
    %20 = vector.load %arg7[%c0_15, %c0_16] : memref<1x8xf32, #tpu.memory_space<vmem>>, vector<1x8xf32>
    %21 = vector.broadcast %20 : vector<1x8xf32> to vector<8x8xf32>
    %22 = arith.addf %19, %21 : vector<8x8xf32>
    %c0_17 = arith.constant 0 : index
    %c0_18 = arith.constant 0 : index
    %23 = vector.load %arg8[%c0_17, %c0_18] : memref<8x8xf32, #tpu.memory_space<vmem>>, vector<8x8xf32>
    tpu.vector_store %arg8[%c0_17, %c0_18], %22 {strides = array<i32>} : memref<8x8xf32, #tpu.memory_space<vmem>>, vector<8x8xf32>,
    return
  }
  func.func @transform_0(%arg0: i32) -> (i32, i32) {
    %c0_i32 = arith.constant 0 : i32
    %c0_i32_0 = arith.constant 0 : i32
    return %arg0, %c0_i32 : i32, i32
  }
  func.func @transform_1(%arg0: i32) -> (i32, i32) {
    %c0_i32 = arith.constant 0 : i32
    %c0_i32_0 = arith.constant 0 : i32
    %c0_i32_1 = arith.constant 0 : i32
    return %c0_i32, %c0_i32_0 : i32, i32
  }
  func.func @transform_2(%arg0: i32) -> (i32, i32) {
    %c0_i32 = arith.constant 0 : i32
    %c0_i32_0 = arith.constant 0 : i32
    %c0_i32_1 = arith.constant 0 : i32
    return %c0_i32, %c0_i32_0 : i32, i32
  }
  func.func @transform_3(%arg0: i32) -> (i32, i32) {
    %c0_i32 = arith.constant 0 : i32
    %c0_i32_0 = arith.constant 0 : i32
    %c0_i32_1 = arith.constant 0 : i32
    return %c0_i32, %c0_i32_0 : i32, i32
  }
  func.func @transform_4(%arg0: i32) -> (i32, i32) {
    %c0_i32 = arith.constant 0 : i32
    %c0_i32_0 = arith.constant 0 : i32
    %c0_i32_1 = arith.constant 0 : i32
    return %c0_i32, %c0_i32_0 : i32, i32
  }
  func.func @transform_5(%arg0: i32) -> (i32, i32) {
    %c0_i32 = arith.constant 0 : i32
    %c0_i32_0 = arith.constant 0 : i32
    %c0_i32_1 = arith.constant 0 : i32
    return %c0_i32, %c0_i32_0 : i32, i32
  }
  func.func @transform_6(%arg0: i32) -> (i32, i32) {
    %c0_i32 = arith.constant 0 : i32
    %c0_i32_0 = arith.constant 0 : i32
    %c0_i32_1 = arith.constant 0 : i32
    return %c0_i32, %c0_i32_0 : i32, i32
  }
  func.func @transform_7(%arg0: i32) -> (i32, i32) {
    %c0_i32 = arith.constant 0 : i32
    %c0_i32_0 = arith.constant 0 : i32
    return %arg0, %c0_i32 : i32, i32
  }
}

</mosaic_0001>

<llo_original>
// kernel: tpu_custom_call.1
$region0: #{tpu_custom_call.1}
  #allocation0 [shape = 'u32[]', space=smem, size = 0x4, offset = 0x4, fixed_abs, tag = 'smem constant byte address 0x4 - core index']
  #allocation1 [shape = 'u32[72,128]{1,0:T(1,128)}', space=vmem, size = 0x9000, scoped, tag = 'internal scratch']
  %s0 = inlined_call_operand.hbm [shape: f32[8,24], index: 0, kind: input, shape index: {}]
  %s1 = inlined_call_operand.hbm [shape: bf16[24,128], index: 1, kind: input, shape index: {}]
  %s2 = inlined_call_operand.vmem [shape: f32[1,128], index: 2, kind: input, shape index: {}]
  %s3 = inlined_call_operand.vmem [shape: bf16[128,128], index: 3, kind: input, shape index: {}]
  %s4 = inlined_call_operand.vmem [shape: f32[1,128], index: 4, kind: input, shape index: {}]
  %s5 = inlined_call_operand.vmem [shape: bf16[128,8], index: 5, kind: input, shape index: {}]
  %s6 = inlined_call_operand.vmem [shape: f32[1,8], index: 6, kind: input, shape index: {}]
  %s7 = inlined_call_operand.hbm [shape: f32[8,8], index: 7, kind: output, shape index: {}]
  %s8 = sld [smem:[#allocation0]]
  $region46: #{tpu_custom_call.1} parent=0
    _
  %s10 = ssub.s32 1, %s8
  %s11 = scalar_select 0, %s10, %s8
  $region1: #{tpu_custom_call.1} parent=0
    #allocation2 [shape = 'u8[4096]{0}', space=vmem, size = 0x1000, scoped, tag = 'input window, operand 0, single buffered']
    #allocation3 [shape = 's32[1]{0}', space=sflag, size = 0x4, scoped, tag = 'scoped memory for tpu_custom_call.1']
    #allocation4 [shape = 's32[1]{0}', space=sflag, size = 0x4, scoped, tag = 'scoped memory for tpu_custom_call.1']
    #allocation5 [shape = 'u8[6144]{0}', space=vmem, size = 0x1800, scoped, tag = 'input window, operand 1, single buffered']
    #allocation6 [shape = 's32[1]{0}', space=sflag, size = 0x4, scoped, tag = 'scoped memory for tpu_custom_call.1']
    #allocation7 [shape = 'u8[4096]{0}', space=vmem, size = 0x1000, scoped, tag = 'output window, operand 0, single buffered']
    %12 = vsyncpa [#allocation3], 0
    %13 = vsyncpa [#allocation6], 0
    %14 = vsyncpa [#allocation4], 0
    // Predicated region
    $region2: #{tpu_custom_call.1} parent=1 // pred_check
      _
    $region3: #{tpu_custom_call.1} parent=1 // pred_check_branch
      %16 = sbr.rel (0) target = $region5
    $region4: #{tpu_custom_call.1} parent=1 // pred_region
      %18 = vsyncadd [#allocation3], 0
      %s20 = sshll.u32 %s0, 4
      %s21 = int_to_ptr.hbm [resolvable:$true] %s20
      %s22 = sshll.u32 [#allocation2], 4
      %s23 = int_to_ptr.vmem [resolvable:$true] %s22
      %25 = dma.hbm_to_vmem [thread:$0]  %s21, 128, %s23, [#allocation3]
    $region5: #{tpu_custom_call.1} parent=1 // pred_fallthru
      _
    // Predicated region
    $region6: #{tpu_custom_call.1} parent=1 // pred_check
      _
    $region7: #{tpu_custom_call.1} parent=1 // pred_check_branch
      %27 = sbr.rel (0) target = $region9
    $region8: #{tpu_custom_call.1} parent=1 // pred_region
      %29 = vsyncadd [#allocation6], 0
      %s30 = sshll.u32 %s1, 4
      %s31 = int_to_ptr.hbm [resolvable:$true] %s30
      %s32 = sshll.u32 [#allocation5], 4
      %s33 = int_to_ptr.vmem [resolvable:$true] %s32
      %38 = dma.hbm_to_vmem [thread:$0]  %s31, 192, %s33, [#allocation6], 64, 64, 4
    $region9: #{tpu_custom_call.1} parent=1 // pred_fallthru
      _
    // Predicated region
    $region10: #{tpu_custom_call.1} parent=1 // pred_check
      _
    $region11: #{tpu_custom_call.1} parent=1 // pred_check_branch
      %40 = sbr.rel (0) target = $region13
    $region12: #{tpu_custom_call.1} parent=1 // pred_region
      _
    $region13: #{tpu_custom_call.1} parent=1 // pred_fallthru
      _
    // Predicated region
    $region14: #{tpu_custom_call.1} parent=1 // pred_check
      _
    $region15: #{tpu_custom_call.1} parent=1 // pred_check_branch
      %42 = sbr.rel (0) target = $region17
    $region16: #{tpu_custom_call.1} parent=1 // pred_region
      _
    $region17: #{tpu_custom_call.1} parent=1 // pred_fallthru
      _
    // Predicated region
    $region18: #{tpu_custom_call.1} parent=1 // pred_check
      _
    $region19: #{tpu_custom_call.1} parent=1 // pred_check_branch
      %44 = sbr.rel (0) target = $region21
    $region20: #{tpu_custom_call.1} parent=1 // pred_region
      _
    $region21: #{tpu_custom_call.1} parent=1 // pred_fallthru
      _
    // Predicated region
    $region22: #{tpu_custom_call.1} parent=1 // pred_check
      _
    $region23: #{tpu_custom_call.1} parent=1 // pred_check_branch
      %46 = sbr.rel (0) target = $region25
    $region24: #{tpu_custom_call.1} parent=1 // pred_region
      _
    $region25: #{tpu_custom_call.1} parent=1 // pred_fallthru
      _
    // Predicated region
    $region26: #{tpu_custom_call.1} parent=1 // pred_check
      _
    $region27: #{tpu_custom_call.1} parent=1 // pred_check_branch
      %48 = sbr.rel (0) target = $region29
    $region28: #{tpu_custom_call.1} parent=1 // pred_region
      _
    $region29: #{tpu_custom_call.1} parent=1 // pred_fallthru
      _
    // Predicated region
    $region30: #{tpu_custom_call.1} parent=1 // pred_check
      _
    $region31: #{tpu_custom_call.1} parent=1 // pred_check_branch
      %50 = sbr.rel (0) target = $region33
    $region32: #{tpu_custom_call.1} parent=1 // pred_region
      %52 = dma.done [#allocation3], 128
    $region33: #{tpu_custom_call.1} parent=1 // pred_fallthru
      _
    // Predicated region
    $region34: #{tpu_custom_call.1} parent=1 // pred_check
      _
    $region35: #{tpu_custom_call.1} parent=1 // pred_check_branch
      %54 = sbr.rel (0) target = $region37
    $region36: #{tpu_custom_call.1} parent=1 // pred_region
      %56 = dma.done [#allocation6], 192
    $region37: #{tpu_custom_call.1} parent=1 // pred_fallthru
      _
    %v58 = vld [vmem:[#allocation2] sm:$0xff]
    %v59 = vpack.c.bf16 %v58, %v58
    %v60 = vld [vmem:[#allocation5] sm:$0xf]
    %v61 = vld [vmem:[#allocation5 + $0x4] sm:$0xf]
    %v62 = vld [vmem:[#allocation5 + $0x8] sm:$0xf]
    %v63 = vld [vmem:[%s2] sm:$0x1]
    %v65 = vperm.slane %v63, 0
    %v70 = vunpack.c.l.b16 %v60
    %v71 = vunpack.c.l.b16 %v61
    %v72 = vunpack.c.l.b16 %v62
    %v73 = vpack.c.b16 %v71, %v70
    %v74 = vpack.c.b16 %v72, %v72
    %vm76 = vcmask 195584
    %v78 = vsel %vm76, %v59, 0
    %vm80 = vcmask 1043456
    %v82 = vsel %vm80, %v74, 0
    %84 = vmatpush.bf16.msra.mxu0 0
    %85 = vmatpush.bf16.msra.mxu0 0
    %86 = vmatpush.bf16.msra.mxu0 0
    %87 = vmatpush.bf16.msra.mxu0 0
    %88 = vmatpush.bf16.msra.mxu0 0
    %89 = vmatpush.bf16.msra.mxu0 0
    %90 = vmatpush.bf16.msra.mxu0 %v82
    %91 = vmatpush.bf16.msra.mxu0 %v73
    %92 = vmatmul.bf16.gmra.mxu0 %v78
    %v93 = vpop.f32.mrf.mxu0
    %v94 = vadd.f32 %v65, %v93
    %v95 = vpop.f32.mrf.mxu0
    %96 = vdwg.mxu0
    %v97 = vmax.f32 %v94, 0.0
    %v98 = vpack.c.bf16 %v97, %v97
    %v99 = vld [vmem:[%s3] sm:$0xf]
    %v100 = vld [vmem:[%s3 + $0x4] sm:$0xf]
    %v101 = vld [vmem:[%s3 + $0x8] sm:$0xf]
    %v102 = vld [vmem:[%s3 + $0xc] sm:$0xf]
    %v103 = vld [vmem:[%s3 + $0x10] sm:$0xf]
    %v104 = vld [vmem:[%s3 + $0x14] sm:$0xf]
    %v105 = vld [vmem:[%s3 + $0x18] sm:$0xf]
    %v106 = vld [vmem:[%s3 + $0x1c] sm:$0xf]
    %v107 = vld [vmem:[%s3 + $0x20] sm:$0xf]
    %v108 = vld [vmem:[%s3 + $0x24] sm:$0xf]
    %v109 = vld [vmem:[%s3 + $0x28] sm:$0xf]
    %v110 = vld [vmem:[%s3 + $0x2c] sm:$0xf]
    %v111 = vld [vmem:[%s3 + $0x30] sm:$0xf]
    %v112 = vld [vmem:[%s3 + $0x34] sm:$0xf]
    %v113 = vld [vmem:[%s3 + $0x38] sm:$0xf]
    %v114 = vld [vmem:[%s3 + $0x3c] sm:$0xf]
    %v115 = vld [vmem:[%s4] sm:$0x1]
    %v117 = vperm.slane %v115, 0
    %v135 = vunpack.c.l.b16 %v99
    %v136 = vunpack.c.l.b16 %v100
    %v137 = vunpack.c.l.b16 %v101
    %v138 = vunpack.c.l.b16 %v102
    %v139 = vunpack.c.l.b16 %v103
    %v140 = vunpack.c.l.b16 %v104
    %v141 = vunpack.c.l.b16 %v105
    %v142 = vunpack.c.l.b16 %v106
    %v143 = vunpack.c.l.b16 %v107
    %v144 = vunpack.c.l.b16 %v108
    %v145 = vunpack.c.l.b16 %v109
    %v146 = vunpack.c.l.b16 %v110
    %v147 = vunpack.c.l.b16 %v111
    %v148 = vunpack.c.l.b16 %v112
    %v149 = vunpack.c.l.b16 %v113
    %v150 = vunpack.c.l.b16 %v114
    %v151 = vpack.c.b16 %v136, %v135
    %v152 = vpack.c.b16 %v138, %v137
    %v153 = vpack.c.b16 %v140, %v139
    %v154 = vpack.c.b16 %v142, %v141
    %v155 = vpack.c.b16 %v144, %v143
    %v156 = vpack.c.b16 %v146, %v145
    %v157 = vpack.c.b16 %v148, %v147
    %v158 = vpack.c.b16 %v150, %v149
    %167 = vmatpush.bf16.msra.mxu0 %v158
    %168 = vmatpush.bf16.msra.mxu0 %v157
    %169 = vmatpush.bf16.msra.mxu0 %v156
    %170 = vmatpush.bf16.msra.mxu0 %v155
    %171 = vmatpush.bf16.msra.mxu0 %v154
    %172 = vmatpush.bf16.msra.mxu0 %v153
    %173 = vmatpush.bf16.msra.mxu0 %v152
    %174 = vmatpush.bf16.msra.mxu0 %v151
    %175 = vmatmul.bf16.gmra.mxu0 %v98
    %v176 = vpop.f32.mrf.mxu0
    %v177 = vadd.f32 %v117, %v176
    %v178 = vpop.f32.mrf.mxu0
    %179 = vdwg.mxu0
    %v180 = vmax.f32 %v177, 0.0
    %v181 = vpack.c.bf16 %v180, %v180
    %v182 = vld [vmem:[%s5] sm:$0xf]
    %v183 = vld [vmem:[%s5 + $0x4] sm:$0xf]
    %v184 = vld [vmem:[%s5 + $0x8] sm:$0xf]
    %v185 = vld [vmem:[%s5 + $0xc] sm:$0xf]
    %v186 = vld [vmem:[%s5 + $0x10] sm:$0xf]
    %v187 = vld [vmem:[%s5 + $0x14] sm:$0xf]
    %v188 = vld [vmem:[%s5 + $0x18] sm:$0xf]
    %v189 = vld [vmem:[%s5 + $0x1c] sm:$0xf]
    %v190 = vld [vmem:[%s5 + $0x20] sm:$0xf]
    %v191 = vld [vmem:[%s5 + $0x24] sm:$0xf]
    %v192 = vld [vmem:[%s5 + $0x28] sm:$0xf]
    %v193 = vld [vmem:[%s5 + $0x2c] sm:$0xf]
    %v194 = vld [vmem:[%s5 + $0x30] sm:$0xf]
    %v195 = vld [vmem:[%s5 + $0x34] sm:$0xf]
    %v196 = vld [vmem:[%s5 + $0x38] sm:$0xf]
    %v197 = vld [vmem:[%s5 + $0x3c] sm:$0xf]
    %v198 = vld [vmem:[%s6] sm:$0x1]
    %v200 = vperm.slane %v198, 0
    %v218 = vunpack.c.l.b16 %v182
    %v219 = vunpack.c.l.b16 %v183
    %v220 = vunpack.c.l.b16 %v184
    %v221 = vunpack.c.l.b16 %v185
    %v222 = vunpack.c.l.b16 %v186
    %v223 = vunpack.c.l.b16 %v187
    %v224 = vunpack.c.l.b16 %v188
    %v225 = vunpack.c.l.b16 %v189
    %v226 = vunpack.c.l.b16 %v190
    %v227 = vunpack.c.l.b16 %v191
    %v228 = vunpack.c.l.b16 %v192
    %v229 = vunpack.c.l.b16 %v193
    %v230 = vunpack.c.l.b16 %v194
    %v231 = vunpack.c.l.b16 %v195
    %v232 = vunpack.c.l.b16 %v196
    %v233 = vunpack.c.l.b16 %v197
    %v234 = vpack.c.b16 %v219, %v218
    %v235 = vpack.c.b16 %v221, %v220
    %v236 = vpack.c.b16 %v223, %v222
    %v237 = vpack.c.b16 %v225, %v224
    %v238 = vpack.c.b16 %v227, %v226
    %v239 = vpack.c.b16 %v229, %v228
    %v240 = vpack.c.b16 %v231, %v230
    %v241 = vpack.c.b16 %v233, %v232
    %250 = vmatpush.bf16.msra.mxu0 %v241
    %251 = vmatpush.bf16.msra.mxu0 %v240
    %252 = vmatpush.bf16.msra.mxu0 %v239
    %253 = vmatpush.bf16.msra.mxu0 %v238
    %254 = vmatpush.bf16.msra.mxu0 %v237
    %255 = vmatpush.bf16.msra.mxu0 %v236
    %256 = vmatpush.bf16.msra.mxu0 %v235
    %257 = vmatpush.bf16.msra.mxu0 %v234
    %258 = vmatmul.bf16.gmra.mxu0 %v181
    %v259 = vpop.f32.mrf.mxu0
    %v260 = vadd.f32 %v200, %v259
    %v261 = vpop.f32.mrf.mxu0
    %262 = vdwg.mxu0
    %vm263 = vcmask 64512
    %264 = vst.msk [vmem:[#allocation7] sm:$0xff] %vm263, %v260
    // Predicated region
    $region38: #{tpu_custom_call.1} parent=1 // pred_check
      _
    $region39: #{tpu_custom_call.1} parent=1 // pred_check_branch
      %266 = sbr.rel (0) target = $region41
    $region40: #{tpu_custom_call.1} parent=1 // pred_region
      %268 = vsyncadd [#allocation4], 0
      %s270 = sshll.u32 [#allocation7], 4
      %s271 = int_to_ptr.vmem [resolvable:$true] %s270
      %s272 = sshll.u32 %s7, 4
      %s273 = int_to_ptr.hbm [resolvable:$true] %s272
      %275 = dma.vmem_to_hbm [thread:$0]  %s271, 128, %s273, [#allocation4]
    $region41: #{tpu_custom_call.1} parent=1 // pred_fallthru
      _
    // Predicated region
    $region42: #{tpu_custom_call.1} parent=1 // pred_check
      _
    $region43: #{tpu_custom_call.1} parent=1 // pred_check_branch
      %277 = sbr.rel (0) target = $region45
    $region44: #{tpu_custom_call.1} parent=1 // pred_region
      %279 = dma.done [#allocation4], 128
    $region45: #{tpu_custom_call.1} parent=1 // pred_fallthru
      _
    %280 = vsyncpa [#allocation3], 1
    %281 = vsyncpa [#allocation6], 1
    %282 = vsyncpa [#allocation4], 1

</llo_original>
